<compile_context>
chip_gen: v7x
topology: tpu7x:2x2x1
jax: 0.10.0
libtpu: 0.0.40
codegen_flags: <defaults>
</compile_context>

<pallas_src>
import jax
import jax.numpy as jnp
from jax.experimental import pallas as pl
from jax.experimental.pallas import tpu as pltpu


_EPS = 1e-12                          # torch F.normalize default eps
_VMEM_BUDGET = 40 * 1024 * 1024       # v7x-safe (64 MiB/TC physical); fine on v5e/v6e
_VMEM_MARGIN = 4 * 1024 * 1024        # headroom for compiler-internal scratch
_TARGET_STEP_BYTES = 4 * 1024 * 1024  # ~4 MiB of HBM traffic per grid step
_MAX_TILE_N = 8192
_MAX_RESIDENT_K = 2048                # keep whole K resident up to this in_channels


def _round_up(v, m):
    return ((v + m - 1) // m) * m


def _lane(c):
    return _round_up(c, 128)


def _update_graph_kernel(x_ref, w_ref, o_ref, acc_ref):
    """K-tiled matmul + per-row L1 normalization.

    Partial batch tiles are safe ONLY because the normalization is strictly
    per-row: out-of-bounds rows compute garbage but their stores are masked.
    Do not introduce cross-row reductions here.
    Zero-padded output columns (if any) contribute |0| = 0 to the L1 sum, so
    the normalization is identical to the unpadded computation.
    """
    k = pl.program_id(1)

    @pl.when(k == 0)
    def _():
        acc_ref[...] = jnp.zeros_like(acc_ref)

    acc_ref[...] += jnp.dot(x_ref[...], w_ref[...],
                            preferred_element_type=jnp.float32)

    @pl.when(k == pl.num_programs(1) - 1)
    def _():
        out = acc_ref[...]
        l1 = jnp.sum(jnp.abs(out), axis=1, keepdims=True)
        denom = jnp.maximum(l1, _EPS)
        # EUP approximate reciprocal + one Newton-Raphson step -> ~f32 accuracy
        # without a VPU divide sequence.
        inv = pl.reciprocal(denom, approx=True)
        inv = inv * (2.0 - denom * inv)
        o_ref[...] = (out * inv).astype(o_ref.dtype)


def prepare_weight(W, pad_threshold=1.25):
    """Prepare (and maybe lane-pad) the weight ONCE, outside the per-call path.

    Returns (W_eff, out_channels).  out_channels is only padded up to a
    multiple of 128 when the padding overhead is small (<= ~25%); for tiny
    out_channels the extra output write traffic + wrapper slice pass would
    dominate, so we keep the native width (masked stores).
    """
    W = jnp.asarray(W, dtype=jnp.float32)
    in_c, out_c = W.shape
    out_c_pad = _round_up(out_c, 128)
    if out_c_pad != out_c and out_c_pad <= int(out_c * pad_threshold):
        W = jnp.zeros((in_c, out_c_pad), W.dtype).at[:, :out_c].set(W)
    return W, out_c


def _choose_tiles(N, in_c, out_c_eff, in_itemsize, tile_n=None, tile_k=None):
    # --- K tile.  Partial K blocks would read undefined pad values into the
    # accumulator, so tk must divide in_c exactly; fall back to the whole
    # reduction resident when in_c is small or not 128-divisible.
    if tile_k is not None:
        tk = int(tile_k)
        assert in_c % tk == 0 and (tk == in_c or tk % 128 == 0)
    elif in_c <= _MAX_RESIDENT_K or in_c % 128 != 0:
        tk = in_c
    else:
        tk = 128
        for cand in range(_MAX_RESIDENT_K, 127, -128):
            if in_c % cand == 0:
                tk = cand
                break

    # --- Batch tile from the HBM byte budget, capped by the VMEM rule
    #     2*x + 2*W + 2*out + acc <= budget   (VMEM (8,128)-padded sizes).
    if tile_n is None:
        traffic_per_row = in_itemsize * tk + 4 * out_c_eff
        tn = _TARGET_STEP_BYTES // max(traffic_per_row, 1)
    else:
        tn = int(tile_n)
    w_vmem = 2 * _round_up(tk, 8) * _lane(out_c_eff) * in_itemsize
    per_row_vmem = 2 * _lane(tk) * in_itemsize + 3 * _lane(out_c_eff) * 4
    vmem_rows = (_VMEM_BUDGET - _VMEM_MARGIN - w_vmem) // per_row_vmem
    tn = min(tn, vmem_rows, _MAX_TILE_N, _round_up(N, 8))
    tn = max(8, (tn // 8) * 8)
    return tn, tk


def update_graph(x, W_eff, out_channels=None, *, tile_n=None, tile_k=None,
                 compute_dtype=None):
    """out_prob = L1-row-normalize(x @ W).

    `W_eff` should come from `prepare_weight` (padding hoisted out of the
    per-call path).  `compute_dtype=jnp.bfloat16` optionally halves HBM read
    traffic (f32 accumulate / f32 epilogue kept); leave None for strict f32
    parity with the torch module.
    """
    N, in_c = x.shape
    in_c2, out_c_eff = W_eff.shape
    assert in_c == in_c2
    out_c = out_c_eff if out_channels is None else out_channels

    if compute_dtype is not None:
        x = x.astype(compute_dtype)
        W_eff = W_eff.astype(compute_dtype)
    in_itemsize = jnp.dtype(x.dtype).itemsize

    tn, tk = _choose_tiles(N, in_c, out_c_eff, in_itemsize, tile_n, tile_k)
    grid_n = pl.cdiv(N, tn)
    grid_k = in_c // tk

    # VMEM limit from the actual (padded) block bytes + headroom.
    x_blk = _round_up(tn, 8) * _lane(tk) * in_itemsize
    w_blk = _round_up(tk, 8) * _lane(out_c_eff) * in_itemsize
    o_blk = _round_up(tn, 8) * _lane(out_c_eff) * 4
    vmem_limit = int(min(_VMEM_BUDGET,
                         2 * x_blk + 2 * w_blk + 3 * o_blk + _VMEM_MARGIN))

    out = pl.pallas_call(
        _update_graph_kernel,
        out_shape=jax.ShapeDtypeStruct((N, out_c_eff), jnp.float32),
        grid_spec=pltpu.PrefetchScalarGridSpec(
            num_scalar_prefetch=0,
            grid=(grid_n, grid_k),
            in_specs=[
                pl.BlockSpec((tn, tk), lambda i, k: (i, k)),          # x tile
                pl.BlockSpec((tk, out_c_eff), lambda i, k: (k, 0)),    # W tile (resident if grid_k==1)
            ],
            out_specs=pl.BlockSpec((tn, out_c_eff), lambda i, k: (i, 0)),
            scratch_shapes=[pltpu.VMEM((tn, out_c_eff), jnp.float32)],  # K accumulator
        ),
        compiler_params=pltpu.CompilerParams(
            # Batch tiles shardable across v7x's two TensorCores; K is a reduction.
            dimension_semantics=("parallel", "arbitrary"),
            vmem_limit_bytes=vmem_limit,
        ),
    )(x, W_eff)

    if out_c_eff != out_c:
        out = out[:, :out_c]   # only taken on the (cheap) padded-W path
    return out


def update_graph_ref(x, W):
    out = x @ W
    l1 = jnp.sum(jnp.abs(out), axis=1, keepdims=True)
    return out / jnp.maximum(l1, _EPS)


if __name__ == "__main__":
    key = jax.random.PRNGKey(0)
    k1, k2, k3, k4 = jax.random.split(key, 4)

    # Case 1: module-sized shapes.  out_channels=16 << 128 -> unpadded output
    # (masked stores), single K tile, grid (1, 1).
    batch, in_channels, out_channels = 8, 32, 16
    x = jax.random.normal(k1, (batch, in_channels), dtype=jnp.float32)
    W = jax.random.normal(k2, (in_channels, out_channels), dtype=jnp.float32)
    W_eff, out_c = prepare_weight(W)           # hoisted out of the per-call path
    out = jax.block_until_ready(update_graph(x, W_eff, out_c))
    ref = update_graph_ref(x, W)
    assert out.shape == (batch, out_channels)
    assert jnp.allclose(out, ref, atol=1e-5, rtol=1e-5)

    # Case 2: exercise the K-tiled accumulator and the padded-output path
    # (out_channels=120 is within 25% of 128 -> lane-dense padded store).
    batch2, in_c2, out_c2 = 16, 256, 120
    x2 = jax.random.normal(k3, (batch2, in_c2), dtype=jnp.float32)
    W2 = jax.random.normal(k4, (in_c2, out_c2), dtype=jnp.float32)
    W2_eff, oc2 = prepare_weight(W2)
    out2 = jax.block_until_ready(update_graph(x2, W2_eff, oc2, tile_k=128))
    ref2 = update_graph_ref(x2, W2)
    assert out2.shape == (batch2, out_c2)
    assert jnp.allclose(out2, ref2, atol=1e-5, rtol=1e-5)

    print("KERNEL_OK")
</pallas_src>

<mosaic_0001>
module attributes {stable_mosaic.version = 11 : i64} {
  func.func @_update_graph_kernel(%arg0: i32, %arg1: i32, %arg2: memref<8x32xf32, #tpu.memory_space<vmem>>, %arg3: memref<32x16xf32, #tpu.memory_space<vmem>>, %arg4: memref<8x16xf32, #tpu.memory_space<vmem>>, %arg5: memref<8x16xf32, #tpu.memory_space<vmem>>) attributes {dimension_semantics = [#tpu.dimension_semantics<parallel>, #tpu.dimension_semantics<arbitrary>], iteration_bounds = array<i64: 1, 1>, scalar_prefetch = 0 : i64, scratch_operands = 1 : i64, tpu.core_type = #tpu.core_type<tc>, window_params = [{transform_indices = @transform_0, window_bounds = array<i64: 8, 32>}, {transform_indices = @transform_1, window_bounds = array<i64: 32, 16>}, {transform_indices = @transform_2, window_bounds = array<i64: 8, 16>}]} {
    %c0_i32 = arith.constant 0 : i32
    %0 = arith.cmpi eq, %arg1, %c0_i32 : i32
    %1 = arith.extui %0 : i1 to i32
    %c0_i32_0 = arith.constant 0 : i32
    %2 = arith.cmpi ne, %1, %c0_i32_0 : i32
    scf.if %2 {
      %cst_10 = arith.constant 0.000000e+00 : f32
      %12 = vector.broadcast %cst_10 : f32 to vector<8x16xf32>
      %c0_11 = arith.constant 0 : index
      %c0_12 = arith.constant 0 : index
      %13 = vector.load %arg5[%c0_11, %c0_12] : memref<8x16xf32, #tpu.memory_space<vmem>>, vector<8x16xf32>
      tpu.vector_store %arg5[%c0_11, %c0_12], %12 {strides = array<i32>} : memref<8x16xf32, #tpu.memory_space<vmem>>, vector<8x16xf32>,
    } else {
    }
    %c0 = arith.constant 0 : index
    %c0_1 = arith.constant 0 : index
    %3 = vector.load %arg5[%c0, %c0_1] : memref<8x16xf32, #tpu.memory_space<vmem>>, vector<8x16xf32>
    %c0_2 = arith.constant 0 : index
    %c0_3 = arith.constant 0 : index
    %4 = vector.load %arg2[%c0_2, %c0_3] : memref<8x32xf32, #tpu.memory_space<vmem>>, vector<8x32xf32>
    %c0_4 = arith.constant 0 : index
    %c0_5 = arith.constant 0 : index
    %5 = vector.load %arg3[%c0_4, %c0_5] : memref<32x16xf32, #tpu.memory_space<vmem>>, vector<32x16xf32>
    %cst = arith.constant dense<0.000000e+00> : vector<8x16xf32>
    %6 = tpu.matmul %4, %5, %cst {dimension_numbers = #tpu.dot_dimension_numbers<[1], [0], [0], [1], [0, 0, 1, 1], [], []>} : vector<8x32xf32>, vector<32x16xf32>, vector<8x16xf32> -> vector<8x16xf32>
    %7 = arith.addf %3, %6 : vector<8x16xf32>
    %c0_6 = arith.constant 0 : index
    %c0_7 = arith.constant 0 : index
    %8 = vector.load %arg5[%c0_6, %c0_7] : memref<8x16xf32, #tpu.memory_space<vmem>>, vector<8x16xf32>
    tpu.vector_store %arg5[%c0_6, %c0_7], %7 {strides = array<i32>} : memref<8x16xf32, #tpu.memory_space<vmem>>, vector<8x16xf32>,
    %c0_i32_8 = arith.constant 0 : i32
    %9 = arith.cmpi eq, %arg1, %c0_i32_8 : i32
    %10 = arith.extui %9 : i1 to i32
    %c0_i32_9 = arith.constant 0 : i32
    %11 = arith.cmpi ne, %10, %c0_i32_9 : i32
    scf.if %11 {
      %c0_10 = arith.constant 0 : index
      %c0_11 = arith.constant 0 : index
      %12 = vector.load %arg5[%c0_10, %c0_11] : memref<8x16xf32, #tpu.memory_space<vmem>>, vector<8x16xf32>
      %13 = math.absf %12 : vector<8x16xf32>
      %cst_12 = arith.constant dense<0.000000e+00> : vector<8xf32>
      %14 = vector.multi_reduction <add>, %13, %cst_12 [1] : vector<8x16xf32> to vector<8xf32>
      %15 = vector.shape_cast %14 : vector<8xf32> to vector<8x1xf32>
      %cst_13 = arith.constant 9.99999996E-13 : f32
      %16 = vector.broadcast %cst_13 : f32 to vector<8x1xf32>
      %17 = arith.maximumf %15, %16 : vector<8x1xf32>
      %18 = tpu.reciprocal %17 {approx = true} : vector<8x1xf32> -> vector<8x1xf32>
      %19 = arith.mulf %17, %18 : vector<8x1xf32>
      %cst_14 = arith.constant 2.000000e+00 : f32
      %20 = vector.broadcast %cst_14 : f32 to vector<8x1xf32>
      %21 = arith.subf %20, %19 : vector<8x1xf32>
      %22 = arith.mulf %18, %21 : vector<8x1xf32>
      %23 = vector.broadcast %22 : vector<8x1xf32> to vector<8x16xf32>
      %24 = arith.mulf %12, %23 : vector<8x16xf32>
      %c0_15 = arith.constant 0 : index
      %c0_16 = arith.constant 0 : index
      %25 = vector.load %arg4[%c0_15, %c0_16] : memref<8x16xf32, #tpu.memory_space<vmem>>, vector<8x16xf32>
      tpu.vector_store %arg4[%c0_15, %c0_16], %24 {strides = array<i32>} : memref<8x16xf32, #tpu.memory_space<vmem>>, vector<8x16xf32>,
    } else {
    }
    return
  }
  func.func @transform_0(%arg0: i32, %arg1: i32) -> (i32, i32) {
    %c0_i32 = arith.constant 0 : i32
    return %arg0, %arg1 : i32, i32
  }
  func.func @transform_1(%arg0: i32, %arg1: i32) -> (i32, i32) {
    %c0_i32 = arith.constant 0 : i32
    %c0_i32_0 = arith.constant 0 : i32
    return %arg1, %c0_i32 : i32, i32
  }
  func.func @transform_2(%arg0: i32, %arg1: i32) -> (i32, i32) {
    %c0_i32 = arith.constant 0 : i32
    %c0_i32_0 = arith.constant 0 : i32
    return %arg0, %c0_i32 : i32, i32
  }
}

</mosaic_0001>

<llo_original>
// kernel: tpu_custom_call.1
$region0: #{tpu_custom_call.1}
  #allocation0 [shape = 'u32[]', space=smem, size = 0x4, offset = 0x4, fixed_abs, tag = 'smem constant byte address 0x4 - core index']
  #allocation1 [shape = 'u32[144,128]{1,0:T(1,128)}', space=vmem, size = 0x12000, scoped, tag = 'internal scratch']
  #allocation2 [shape = 'f32[8,16]{1,0:T(8,128)}', space=vmem, size = 0x1000, scoped, tag = 'scratch operand']
  %s0 = inlined_call_operand.vmem [shape: f32[8,32], index: 0, kind: input, shape index: {}]
  %s1 = inlined_call_operand.vmem [shape: f32[32,16], index: 1, kind: input, shape index: {}]
  %s2 = inlined_call_operand.hbm [shape: f32[8,16], index: 2, kind: output, shape index: {}]
  %s3 = sld [smem:[#allocation0]]
  $region26: #{tpu_custom_call.1} parent=0
    _
  %s5 = ssub.s32 1, %s3
  %s6 = scalar_select 0, %s5, %s3
  $region1: #{tpu_custom_call.1} parent=0
    #allocation3 [shape = 'u8[4096]{0}', space=vmem, size = 0x1000, scoped, tag = 'output window, operand 0, single buffered']
    #allocation4 [shape = 's32[1]{0}', space=sflag, size = 0x4, scoped, tag = 'scoped memory for tpu_custom_call.1']
    %7 = vsyncpa [#allocation4], 0
    // Predicated region
    $region2: #{tpu_custom_call.1} parent=1 // pred_check
      _
    $region3: #{tpu_custom_call.1} parent=1 // pred_check_branch
      %9 = sbr.rel (0) target = $region5
    $region4: #{tpu_custom_call.1} parent=1 // pred_region
      _
    $region5: #{tpu_custom_call.1} parent=1 // pred_fallthru
      _
    // Predicated region
    $region6: #{tpu_custom_call.1} parent=1 // pred_check
      _
    $region7: #{tpu_custom_call.1} parent=1 // pred_check_branch
      %11 = sbr.rel (0) target = $region9
    $region8: #{tpu_custom_call.1} parent=1 // pred_region
      _
    $region9: #{tpu_custom_call.1} parent=1 // pred_fallthru
      _
    %p12 = scmp.eq.s32.totalorder 0, 0
    // Predicated region
    $region10: #{tpu_custom_call.1} parent=1 // pred_check
      %p13 = pneg %p12
    $region11: #{tpu_custom_call.1} parent=1 // pred_check_branch
      %15 = sbr.rel (%p13) target = $region13
    $region12: #{tpu_custom_call.1} parent=1 // pred_region
      %vm16 = vcmask 130048
      %17 = vst.msk [vmem:[#allocation2] sm:$0xff] %vm16, 0.0
    $region13: #{tpu_custom_call.1} parent=1 // pred_fallthru
      _
    %v18 = vld [vmem:[#allocation2] sm:$0xff]
    %v19 = vld [vmem:[%s0] sm:$0xff]
    %v20 = vld [vmem:[%s1] sm:$0xff]
    %v21 = vld [vmem:[%s1 + $0x8] sm:$0xff]
    %v22 = vld [vmem:[%s1 + $0x10] sm:$0xff]
    %v23 = vld [vmem:[%s1 + $0x18] sm:$0xff]
    %vm24 = vcmask 261120
    %v26 = vsel %vm24, %v19, 0
    %28 = vmatprep.subr.mxu0 0.0
    %29 = vmatpush1.msra.mxu0 %v20
    %30 = vmatprep.subr.mxu0 0.0
    %31 = vmatpush1.msra.mxu0 %v21
    %32 = vmatprep.subr.mxu0 0.0
    %33 = vmatpush1.msra.mxu0 %v22
    %34 = vmatprep.subr.mxu0 0.0
    %35 = vmatpush1.msra.mxu0 %v23
    %36 = vmatprep.subr.mxu0 0.0
    %37 = vmatpush1.msra.mxu0 0.0
    %38 = vmatprep.subr.mxu0 0.0
    %39 = vmatpush1.msra.mxu0 0.0
    %40 = vmatprep.subr.mxu0 0.0
    %41 = vmatpush1.msra.mxu0 0.0
    %42 = vmatprep.subr.mxu0 0.0
    %43 = vmatpush1.msra.mxu0 0.0
    %44 = vmatprep.subr.mxu0 0.0
    %45 = vmatpush1.msra.mxu0 0.0
    %46 = vmatprep.subr.mxu0 0.0
    %47 = vmatpush1.msra.mxu0 0.0
    %48 = vmatprep.subr.mxu0 0.0
    %49 = vmatpush1.msra.mxu0 0.0
    %50 = vmatprep.subr.mxu0 0.0
    %51 = vmatpush1.msra.mxu0 0.0
    %52 = vmatprep.subr.mxu0 0.0
    %53 = vmatpush1.msra.mxu0 0.0
    %54 = vmatprep.subr.mxu0 0.0
    %55 = vmatpush1.msra.mxu0 0.0
    %56 = vmatprep.subr.mxu0 0.0
    %57 = vmatpush1.msra.mxu0 0.0
    %58 = vmatprep.subr.mxu0 0.0
    %59 = vmatpush1.msra.mxu0 0.0
    %60 = vmatprep.subr.mxu0 0.0
    %61 = vmatpush1.msra.mxu0 0.0
    %62 = vmatprep.subr.mxu0 0.0
    %63 = vmatpush1.msra.mxu0 0.0
    %64 = vmatprep.subr.mxu0 0.0
    %65 = vmatpush1.msra.mxu0 0.0
    %66 = vmatprep.subr.mxu0 0.0
    %67 = vmatpush1.msra.mxu0 0.0
    %68 = vmatprep.subr.mxu0 0.0
    %69 = vmatpush1.msra.mxu0 0.0
    %70 = vmatprep.subr.mxu0 0.0
    %71 = vmatpush1.msra.mxu0 0.0
    %72 = vmatprep.subr.mxu0 0.0
    %73 = vmatpush1.msra.mxu0 0.0
    %74 = vmatprep.subr.mxu0 0.0
    %75 = vmatpush1.msra.mxu0 0.0
    %76 = vmatprep.subr.mxu0 0.0
    %77 = vmatpush1.msra.mxu0 0.0
    %78 = vmatprep.subr.mxu0 0.0
    %79 = vmatpush1.msra.mxu0 0.0
    %80 = vmatprep.subr.mxu0 0.0
    %81 = vmatpush1.msra.mxu0 0.0
    %82 = vmatprep.subr.mxu0 0.0
    %83 = vmatpush1.msra.mxu0 0.0
    %84 = vmatprep.subr.mxu0 0.0
    %85 = vmatpush1.msra.mxu0 0.0
    %86 = vmatprep.subr.mxu0 0.0
    %87 = vmatpush1.msra.mxu0 0.0
    %88 = vmatprep.subr.mxu0 0.0
    %89 = vmatpush1.msra.mxu0 0.0
    %90 = vmatprep.subr.mxu0 0.0
    %91 = vmatpush1.msra.mxu0 0.0
    %92 = vmatprep.mubr.f32.mxu0 0.0
    %93 = vmatmul.mubr.f32.gmra.mrb[0].mxu0 %v26
    %v94 = vpop.f32.mrb[0].mxu0
    %v95 = vadd.f32 0.0, %v94
    %v96 = vpop.f32.mrb[0].mxu0
    %97 = vdwg.mxu0
    %v98 = vadd.f32 %v18, %v95
    %vm99 = vcmask 130048
    %100 = vst.msk [vmem:[#allocation2] sm:$0xff] %vm99, %v98
    // Predicated region
    $region14: #{tpu_custom_call.1} parent=1 // pred_check
      %p101 = pneg %p12
    $region15: #{tpu_custom_call.1} parent=1 // pred_check_branch
      %103 = sbr.rel (%p101) target = $region17
    $region16: #{tpu_custom_call.1} parent=1 // pred_region
      %v104 = vld [vmem:[#allocation2] sm:$0xff]
      %v105 = vand.u32 2147483647, %v104
      %v106 = vsel %vm99, %v105, 0.0
      %107 = vadd.xlane.f32.xlu0 %v106
      %v108 = vpop.xlane.xlu0 %107
      %v109 = vmax.f32 %v108, 1e-12
      %v110 = vrcp.pop %v109
      %v111 = vmul.f32 %v109, %v110
      %v112 = vsub.f32 2.0, %v111
      %v113 = vmul.f32 %v110, %v112
      %v114 = vmul.f32 %v104, %v113
      %115 = vst.msk [vmem:[#allocation3] sm:$0xff] %vm99, %v114
    $region17: #{tpu_custom_call.1} parent=1 // pred_fallthru
      _
    // Predicated region
    $region18: #{tpu_custom_call.1} parent=1 // pred_check
      _
    $region19: #{tpu_custom_call.1} parent=1 // pred_check_branch
      %117 = sbr.rel (0) target = $region21
    $region20: #{tpu_custom_call.1} parent=1 // pred_region
      %s119 = ssub.s32 128, 128
      %120 = vsyncadd [#allocation4], %s119
      %s122 = sshll.u32 [#allocation3], 4
      %s123 = int_to_ptr.vmem [resolvable:$true] %s122
      %125 = dma.vmem_to_hbm [thread:$0]  %s123, 128, %s2, [#allocation4]
    $region21: #{tpu_custom_call.1} parent=1 // pred_fallthru
      _
    // Predicated region
    $region22: #{tpu_custom_call.1} parent=1 // pred_check
      _
    $region23: #{tpu_custom_call.1} parent=1 // pred_check_branch
      %127 = sbr.rel (0) target = $region25
    $region24: #{tpu_custom_call.1} parent=1 // pred_region
      %128 = dma.done [#allocation4], 128
    $region25: #{tpu_custom_call.1} parent=1 // pred_fallthru
      _
    %129 = vsyncpa [#allocation4], 1

</llo_original>
